<compile_context>
chip_gen: v7x
topology: tpu7x:2x2x1
jax: 0.10.0
libtpu: 0.0.40
codegen_flags: <defaults>
</compile_context>

<pallas_src>
import jax
import jax.numpy as jnp
from jax.experimental import pallas as pl
from jax.experimental.pallas import tpu as pltpu


def mlp_kernel(x_ref, w1_ref, b1_ref, w2_ref, b2_ref, o_ref):
    # x_ref:  (5, TB)  lane-dense activations (batch on lanes)
    # w1_ref: (10, 5)  b1_ref: (10, 1) f32
    # w2_ref: (1, 10)  b2_ref: (1, 1)  f32 scalar in SMEM
    # o_ref:  (1, TB)
    h = jnp.dot(w1_ref[...], x_ref[...], preferred_element_type=jnp.float32)
    h = jnp.maximum(h + b1_ref[...], 0.0)                       # bias + ReLU in f32
    y = jnp.dot(w2_ref[...], h.astype(w2_ref.dtype),
                preferred_element_type=jnp.float32)
    o_ref[...] = (y + b2_ref[0, 0]).astype(o_ref.dtype)


def simple_torch_model_forward(x, w1, b1, w2, b2, *, block_b=512,
                               matmul_dtype=jnp.float32):
    """x: (B, 5) -> (B, 1).  Params in PyTorch layout: w1 (10,5), b1 (10,),
    w2 (1,10), b2 (1,).  matmul_dtype=jnp.bfloat16 halves the dominant input
    stream on v6e/v7x (f32 accumulate is kept); use f32 on v5e."""
    B = x.shape[0]
    lane = 128
    tb = min(block_b, pl.cdiv(B, lane) * lane)     # >=128, clamps for tiny batches
    padded_b = pl.cdiv(B, tb) * tb                 # pad batch to a multiple of TB

    # lane-dense (features, batch) layout, zero-padded tail columns
    xt = jnp.zeros((5, padded_b), matmul_dtype).at[:, :B].set(
        x.T.astype(matmul_dtype))
    w1m = w1.astype(matmul_dtype)                      # (10, 5)
    w2m = w2.astype(matmul_dtype)                      # (1, 10)
    b1c = b1.reshape(10, 1).astype(jnp.float32)        # column broadcast, f32
    b2s = b2.reshape(1, 1).astype(jnp.float32)         # scalar -> SMEM

    out = pl.pallas_call(
        mlp_kernel,
        out_shape=jax.ShapeDtypeStruct((1, padded_b), jnp.float32),
        grid=(padded_b // tb,),
        in_specs=[
            pl.BlockSpec((5, tb), lambda i: (0, i)),           # x tile (pipelined)
            pl.BlockSpec((10, 5), lambda i: (0, 0)),           # W1, VMEM-resident
            pl.BlockSpec((10, 1), lambda i: (0, 0)),           # b1, VMEM-resident
            pl.BlockSpec((1, 10), lambda i: (0, 0)),           # W2, VMEM-resident
            pl.BlockSpec(memory_space=pltpu.MemorySpace.SMEM), # b2 scalar
        ],
        out_specs=pl.BlockSpec((1, tb), lambda i: (0, i)),     # lane-dense store
        compiler_params=pltpu.CompilerParams(
            dimension_semantics=("parallel",)),
    )(xt, w1m, b1c, w2m, b2s)

    return out[0, :B].reshape(B, 1)


def init_params(key):
    """Deterministic init mimicking nn.Linear's uniform(-1/sqrt(fan_in), 1/sqrt(fan_in)).
    Stored in native PyTorch layout: W is (out_features, in_features)."""
    k1, k2, k3, k4 = jax.random.split(key, 4)
    lim1 = 1.0 / jnp.sqrt(5.0)
    lim2 = 1.0 / jnp.sqrt(10.0)
    w1 = jax.random.uniform(k1, (10, 5), jnp.float32, -lim1, lim1)
    b1 = jax.random.uniform(k2, (10,), jnp.float32, -lim1, lim1)
    w2 = jax.random.uniform(k3, (1, 10), jnp.float32, -lim2, lim2)
    b2 = jax.random.uniform(k4, (1,), jnp.float32, -lim2, lim2)
    return w1, b1, w2, b2


if __name__ == "__main__":
    key = jax.random.PRNGKey(0)
    k_x, k_p = jax.random.split(key)

    batch = 8   # note: at this size the pallas_call launch dominates; the layout/
                # tiling above only pays off for batch in the thousands+
    x = jax.random.normal(k_x, (batch, 5), jnp.float32)
    w1, b1, w2, b2 = init_params(k_p)

    out = simple_torch_model_forward(x, w1, b1, w2, b2)
    out = jax.block_until_ready(out)

    # reference check in plain JAX (PyTorch semantics: y = relu(x@W1.T+b1)@W2.T+b2)
    ref = jnp.maximum(x @ w1.T + b1, 0.0) @ w2.T + b2
    assert out.shape == (batch, 1)
    assert jnp.allclose(out, ref, atol=1e-5), "mismatch vs reference"

    print("KERNEL_OK")
</pallas_src>

<mosaic_0001>
module attributes {stable_mosaic.version = 11 : i64} {
  func.func @mlp_kernel(%arg0: i32, %arg1: memref<5x128xf32, #tpu.memory_space<vmem>>, %arg2: memref<10x5xf32, #tpu.memory_space<vmem>>, %arg3: memref<10x1xf32, #tpu.memory_space<vmem>>, %arg4: memref<1x10xf32, #tpu.memory_space<vmem>>, %arg5: memref<1x1xf32, #tpu.memory_space<smem>>, %arg6: memref<1x128xf32, #tpu.memory_space<vmem>>) attributes {dimension_semantics = [#tpu.dimension_semantics<parallel>], iteration_bounds = array<i64: 1>, scalar_prefetch = 0 : i64, scratch_operands = 0 : i64, tpu.core_type = #tpu.core_type<tc>, window_params = [{transform_indices = @transform_0, window_bounds = array<i64: 5, 128>}, {pipeline_mode = #tpu.pipeline_mode<synchronous>, transform_indices = @transform_1, window_bounds = array<i64: 10, 5>}, {pipeline_mode = #tpu.pipeline_mode<synchronous>, transform_indices = @transform_2, window_bounds = array<i64: 10, 1>}, {pipeline_mode = #tpu.pipeline_mode<synchronous>, transform_indices = @transform_3, window_bounds = array<i64: 1, 10>}, {transform_indices = @transform_4, window_bounds = array<i64: 1, 1>}, {transform_indices = @transform_5, window_bounds = array<i64: 1, 128>}]} {
    %c0 = arith.constant 0 : index
    %c0_0 = arith.constant 0 : index
    %0 = vector.load %arg2[%c0, %c0_0] : memref<10x5xf32, #tpu.memory_space<vmem>>, vector<10x5xf32>
    %c0_1 = arith.constant 0 : index
    %c0_2 = arith.constant 0 : index
    %1 = vector.load %arg1[%c0_1, %c0_2] : memref<5x128xf32, #tpu.memory_space<vmem>>, vector<5x128xf32>
    %cst = arith.constant dense<0.000000e+00> : vector<10x128xf32>
    %2 = tpu.matmul %0, %1, %cst {dimension_numbers = #tpu.dot_dimension_numbers<[1], [0], [0], [1], [0, 0, 1, 1], [], []>} : vector<10x5xf32>, vector<5x128xf32>, vector<10x128xf32> -> vector<10x128xf32>
    %c0_3 = arith.constant 0 : index
    %c0_4 = arith.constant 0 : index
    %3 = vector.load %arg3[%c0_3, %c0_4] : memref<10x1xf32, #tpu.memory_space<vmem>>, vector<10x1xf32>
    %4 = vector.broadcast %3 : vector<10x1xf32> to vector<10x128xf32>
    %5 = arith.addf %2, %4 : vector<10x128xf32>
    %cst_5 = arith.constant 0.000000e+00 : f32
    %6 = vector.broadcast %cst_5 : f32 to vector<10x128xf32>
    %7 = arith.maximumf %5, %6 : vector<10x128xf32>
    %c0_6 = arith.constant 0 : index
    %c0_7 = arith.constant 0 : index
    %8 = vector.load %arg4[%c0_6, %c0_7] : memref<1x10xf32, #tpu.memory_space<vmem>>, vector<1x10xf32>
    %cst_8 = arith.constant dense<0.000000e+00> : vector<1x128xf32>
    %9 = tpu.matmul %8, %7, %cst_8 {dimension_numbers = #tpu.dot_dimension_numbers<[1], [0], [0], [1], [0, 0, 1, 1], [], []>} : vector<1x10xf32>, vector<10x128xf32>, vector<1x128xf32> -> vector<1x128xf32>
    %c0_9 = arith.constant 0 : index
    %c0_10 = arith.constant 0 : index
    %10 = memref.load %arg5[%c0_9, %c0_10] : memref<1x1xf32, #tpu.memory_space<smem>>
    %11 = vector.broadcast %10 : f32 to vector<1x128xf32>
    %12 = arith.addf %9, %11 : vector<1x128xf32>
    %c0_11 = arith.constant 0 : index
    %c0_12 = arith.constant 0 : index
    %13 = vector.load %arg6[%c0_11, %c0_12] : memref<1x128xf32, #tpu.memory_space<vmem>>, vector<1x128xf32>
    tpu.vector_store %arg6[%c0_11, %c0_12], %12 {strides = array<i32>} : memref<1x128xf32, #tpu.memory_space<vmem>>, vector<1x128xf32>,
    return
  }
  func.func @transform_0(%arg0: i32) -> (i32, i32) {
    %c0_i32 = arith.constant 0 : i32
    %c0_i32_0 = arith.constant 0 : i32
    return %c0_i32, %arg0 : i32, i32
  }
  func.func @transform_1(%arg0: i32) -> (i32, i32) {
    %c0_i32 = arith.constant 0 : i32
    %c0_i32_0 = arith.constant 0 : i32
    %c0_i32_1 = arith.constant 0 : i32
    return %c0_i32, %c0_i32_0 : i32, i32
  }
  func.func @transform_2(%arg0: i32) -> (i32, i32) {
    %c0_i32 = arith.constant 0 : i32
    %c0_i32_0 = arith.constant 0 : i32
    %c0_i32_1 = arith.constant 0 : i32
    return %c0_i32, %c0_i32_0 : i32, i32
  }
  func.func @transform_3(%arg0: i32) -> (i32, i32) {
    %c0_i32 = arith.constant 0 : i32
    %c0_i32_0 = arith.constant 0 : i32
    %c0_i32_1 = arith.constant 0 : i32
    return %c0_i32, %c0_i32_0 : i32, i32
  }
  func.func @transform_4(%arg0: i32) -> (i32, i32) {
    %c0_i32 = arith.constant 0 : i32
    %c0_i32_0 = arith.constant 0 : i32
    %c0_i32_1 = arith.constant 0 : i32
    return %c0_i32, %c0_i32_0 : i32, i32
  }
  func.func @transform_5(%arg0: i32) -> (i32, i32) {
    %c0_i32 = arith.constant 0 : i32
    %c0_i32_0 = arith.constant 0 : i32
    return %c0_i32, %arg0 : i32, i32
  }
}

</mosaic_0001>

<llo_original>
// kernel: tpu_custom_call.1
$region0: #{tpu_custom_call.1}
  #allocation0 [shape = 'u32[]', space=smem, size = 0x4, offset = 0x4, fixed_abs, tag = 'smem constant byte address 0x4 - core index']
  #allocation1 [shape = 'u32[144,128]{1,0:T(1,128)}', space=vmem, size = 0x12000, scoped, tag = 'internal scratch']
  #allocation2 [shape = 'f32[1,1]{1,0:T(1,128)S(6)}', space=smem, size = 0x200, scoped, tag = 'scoped memory for tpu_custom_call.1']
  %s0 = inlined_call_operand.vmem [shape: f32[5,128], index: 0, kind: input, shape index: {}]
  %s1 = inlined_call_operand.vmem [shape: f32[10,5], index: 1, kind: input, shape index: {}]
  %s2 = inlined_call_operand.vmem [shape: f32[10,1], index: 2, kind: input, shape index: {}]
  %s3 = inlined_call_operand.vmem [shape: f32[1,10], index: 3, kind: input, shape index: {}]
  %s4 = inlined_call_operand.<no memory space> [shape: f32[1,1], index: 4, kind: input, shape index: {}]
  %s5 = inlined_call_operand.hbm [shape: f32[1,128], index: 5, kind: output, shape index: {}]
  %s6 = sld [smem:[#allocation0]]
  $region30: #{tpu_custom_call.1} parent=0
    _
  %s8 = ssub.s32 1, %s6
  %s9 = scalar_select 0, %s8, %s6
  %10 = sst [smem:[#allocation2]] %s4
  $region1: #{tpu_custom_call.1} parent=0
    #allocation3 [shape = 'u8[512]{0}', space=vmem, size = 0x400, scoped, tag = 'output window, operand 0, single buffered']
    #allocation4 [shape = 's32[1]{0}', space=sflag, size = 0x4, scoped, tag = 'scoped memory for tpu_custom_call.1']
    %11 = vsyncpa [#allocation4], 0
    // Predicated region
    $region2: #{tpu_custom_call.1} parent=1 // pred_check
      _
    $region3: #{tpu_custom_call.1} parent=1 // pred_check_branch
      %13 = sbr.rel (0) target = $region5
    $region4: #{tpu_custom_call.1} parent=1 // pred_region
      _
    $region5: #{tpu_custom_call.1} parent=1 // pred_fallthru
      _
    // Predicated region
    $region6: #{tpu_custom_call.1} parent=1 // pred_check
      _
    $region7: #{tpu_custom_call.1} parent=1 // pred_check_branch
      %15 = sbr.rel (0) target = $region9
    $region8: #{tpu_custom_call.1} parent=1 // pred_region
      _
    $region9: #{tpu_custom_call.1} parent=1 // pred_fallthru
      _
    // Predicated region
    $region10: #{tpu_custom_call.1} parent=1 // pred_check
      _
    $region11: #{tpu_custom_call.1} parent=1 // pred_check_branch
      %17 = sbr.rel (0) target = $region13
    $region12: #{tpu_custom_call.1} parent=1 // pred_region
      _
    $region13: #{tpu_custom_call.1} parent=1 // pred_fallthru
      _
    // Predicated region
    $region14: #{tpu_custom_call.1} parent=1 // pred_check
      _
    $region15: #{tpu_custom_call.1} parent=1 // pred_check_branch
      %19 = sbr.rel (0) target = $region17
    $region16: #{tpu_custom_call.1} parent=1 // pred_region
      _
    $region17: #{tpu_custom_call.1} parent=1 // pred_fallthru
      _
    // Predicated region
    $region18: #{tpu_custom_call.1} parent=1 // pred_check
      _
    $region19: #{tpu_custom_call.1} parent=1 // pred_check_branch
      %21 = sbr.rel (0) target = $region21
    $region20: #{tpu_custom_call.1} parent=1 // pred_region
      _
    $region21: #{tpu_custom_call.1} parent=1 // pred_fallthru
      _
    %v22 = vld [vmem:[%s1] sm:$0xff]
    %v23 = vld [vmem:[%s1 + $0x8] sm:$0x3]
    %v24 = vld [vmem:[%s0] sm:$0x1f]
    %v25 = vld [vmem:[%s2] sm:$0xff]
    %v26 = vld [vmem:[%s2 + $0x8] sm:$0x3]
    %28 = vset.pattern.permute.xlu0 0
    %29 = vperm.xlu0 %28, %v25
    %v30 = vpop.permute.xlu0 %29
    %33 = vset.pattern.permute.xlu0 0
    %34 = vperm.xlu0 %33, %v26
    %v35 = vpop.permute.xlu0 %34
    %vm37 = vcmask 39936
    %v39 = vsel %vm37, %v22, 0
    %v42 = vsel %vm37, %v23, 0
    %vm44 = vcmask 1044480
    %v46 = vsel %vm44, %v24, 0
    %48 = vmatprep.subr.mxu0 0.0
    %49 = vmatpush1.msra.mxu0 %v46
    %50 = vmatprep.subr.mxu0 0.0
    %51 = vmatpush1.msra.mxu0 0.0
    %52 = vmatprep.subr.mxu0 0.0
    %53 = vmatpush1.msra.mxu0 0.0
    %54 = vmatprep.subr.mxu0 0.0
    %55 = vmatpush1.msra.mxu0 0.0
    %56 = vmatprep.subr.mxu0 0.0
    %57 = vmatpush1.msra.mxu0 0.0
    %58 = vmatprep.subr.mxu0 0.0
    %59 = vmatpush1.msra.mxu0 0.0
    %60 = vmatprep.subr.mxu0 0.0
    %61 = vmatpush1.msra.mxu0 0.0
    %62 = vmatprep.subr.mxu0 0.0
    %63 = vmatpush1.msra.mxu0 0.0
    %64 = vmatprep.subr.mxu0 0.0
    %65 = vmatpush1.msra.mxu0 0.0
    %66 = vmatprep.subr.mxu0 0.0
    %67 = vmatpush1.msra.mxu0 0.0
    %68 = vmatprep.subr.mxu0 0.0
    %69 = vmatpush1.msra.mxu0 0.0
    %70 = vmatprep.subr.mxu0 0.0
    %71 = vmatpush1.msra.mxu0 0.0
    %72 = vmatprep.subr.mxu0 0.0
    %73 = vmatpush1.msra.mxu0 0.0
    %74 = vmatprep.subr.mxu0 0.0
    %75 = vmatpush1.msra.mxu0 0.0
    %76 = vmatprep.subr.mxu0 0.0
    %77 = vmatpush1.msra.mxu0 0.0
    %78 = vmatprep.subr.mxu0 0.0
    %79 = vmatpush1.msra.mxu0 0.0
    %80 = vmatprep.subr.mxu0 0.0
    %81 = vmatpush1.msra.mxu0 0.0
    %82 = vmatprep.subr.mxu0 0.0
    %83 = vmatpush1.msra.mxu0 0.0
    %84 = vmatprep.subr.mxu0 0.0
    %85 = vmatpush1.msra.mxu0 0.0
    %86 = vmatprep.subr.mxu0 0.0
    %87 = vmatpush1.msra.mxu0 0.0
    %88 = vmatprep.subr.mxu0 0.0
    %89 = vmatpush1.msra.mxu0 0.0
    %90 = vmatprep.subr.mxu0 0.0
    %91 = vmatpush1.msra.mxu0 0.0
    %92 = vmatprep.subr.mxu0 0.0
    %93 = vmatpush1.msra.mxu0 0.0
    %94 = vmatprep.subr.mxu0 0.0
    %95 = vmatpush1.msra.mxu0 0.0
    %96 = vmatprep.subr.mxu0 0.0
    %97 = vmatpush1.msra.mxu0 0.0
    %98 = vmatprep.subr.mxu0 0.0
    %99 = vmatpush1.msra.mxu0 0.0
    %100 = vmatprep.subr.mxu0 0.0
    %101 = vmatpush1.msra.mxu0 0.0
    %102 = vmatprep.subr.mxu0 0.0
    %103 = vmatpush1.msra.mxu0 0.0
    %104 = vmatprep.subr.mxu0 0.0
    %105 = vmatpush1.msra.mxu0 0.0
    %106 = vmatprep.subr.mxu0 0.0
    %107 = vmatpush1.msra.mxu0 0.0
    %108 = vmatprep.subr.mxu0 0.0
    %109 = vmatpush1.msra.mxu0 0.0
    %110 = vmatprep.subr.mxu0 0.0
    %111 = vmatpush1.msra.mxu0 0.0
    %112 = vmatprep.mubr.f32.mxu0 0.0
    %113 = vmatmul.mubr.f32.gmra.mrb[0].mxu0 %v39
    %v114 = vpop.f32.mrb[0].mxu0
    %v115 = vadd.f32 %v30, %v114
    %v116 = vpop.f32.mrb[0].mxu0
    %117 = vmatprep.mubr.f32.mxu0 0.0
    %118 = vmatmul.mubr.f32.gmra.mrb[0].mxu0 %v42
    %v119 = vpop.f32.mrb[0].mxu0
    %v120 = vadd.f32 %v35, %v119
    %v121 = vpop.f32.mrb[0].mxu0
    %122 = vdwg.mxu0
    %v123 = vmax.f32 %v115, 0.0
    %v124 = vmax.f32 %v120, 0.0
    %v125 = vld [vmem:[%s3] sm:$0x1]
    %s126 = sld [smem:[#allocation2]]
    %v127 = vstv %s126
    %vm128 = vcmask 80896
    %v130 = vsel %vm128, %v125, 0
    %vm132 = vcmask 1041408
    %v134 = vsel %vm132, %v124, 0
    %136 = vmatprep.subr.mxu0 0.0
    %137 = vmatpush1.msra.mxu0 %v123
    %138 = vmatprep.subr.mxu0 0.0
    %139 = vmatpush1.msra.mxu0 %v134
    %140 = vmatprep.subr.mxu0 0.0
    %141 = vmatpush1.msra.mxu0 0.0
    %142 = vmatprep.subr.mxu0 0.0
    %143 = vmatpush1.msra.mxu0 0.0
    %144 = vmatprep.subr.mxu0 0.0
    %145 = vmatpush1.msra.mxu0 0.0
    %146 = vmatprep.subr.mxu0 0.0
    %147 = vmatpush1.msra.mxu0 0.0
    %148 = vmatprep.subr.mxu0 0.0
    %149 = vmatpush1.msra.mxu0 0.0
    %150 = vmatprep.subr.mxu0 0.0
    %151 = vmatpush1.msra.mxu0 0.0
    %152 = vmatprep.subr.mxu0 0.0
    %153 = vmatpush1.msra.mxu0 0.0
    %154 = vmatprep.subr.mxu0 0.0
    %155 = vmatpush1.msra.mxu0 0.0
    %156 = vmatprep.subr.mxu0 0.0
    %157 = vmatpush1.msra.mxu0 0.0
    %158 = vmatprep.subr.mxu0 0.0
    %159 = vmatpush1.msra.mxu0 0.0
    %160 = vmatprep.subr.mxu0 0.0
    %161 = vmatpush1.msra.mxu0 0.0
    %162 = vmatprep.subr.mxu0 0.0
    %163 = vmatpush1.msra.mxu0 0.0
    %164 = vmatprep.subr.mxu0 0.0
    %165 = vmatpush1.msra.mxu0 0.0
    %166 = vmatprep.subr.mxu0 0.0
    %167 = vmatpush1.msra.mxu0 0.0
    %168 = vmatprep.subr.mxu0 0.0
    %169 = vmatpush1.msra.mxu0 0.0
    %170 = vmatprep.subr.mxu0 0.0
    %171 = vmatpush1.msra.mxu0 0.0
    %172 = vmatprep.subr.mxu0 0.0
    %173 = vmatpush1.msra.mxu0 0.0
    %174 = vmatprep.subr.mxu0 0.0
    %175 = vmatpush1.msra.mxu0 0.0
    %176 = vmatprep.subr.mxu0 0.0
    %177 = vmatpush1.msra.mxu0 0.0
    %178 = vmatprep.subr.mxu0 0.0
    %179 = vmatpush1.msra.mxu0 0.0
    %180 = vmatprep.subr.mxu0 0.0
    %181 = vmatpush1.msra.mxu0 0.0
    %182 = vmatprep.subr.mxu0 0.0
    %183 = vmatpush1.msra.mxu0 0.0
    %184 = vmatprep.subr.mxu0 0.0
    %185 = vmatpush1.msra.mxu0 0.0
    %186 = vmatprep.subr.mxu0 0.0
    %187 = vmatpush1.msra.mxu0 0.0
    %188 = vmatprep.subr.mxu0 0.0
    %189 = vmatpush1.msra.mxu0 0.0
    %190 = vmatprep.subr.mxu0 0.0
    %191 = vmatpush1.msra.mxu0 0.0
    %192 = vmatprep.subr.mxu0 0.0
    %193 = vmatpush1.msra.mxu0 0.0
    %194 = vmatprep.subr.mxu0 0.0
    %195 = vmatpush1.msra.mxu0 0.0
    %196 = vmatprep.subr.mxu0 0.0
    %197 = vmatpush1.msra.mxu0 0.0
    %198 = vmatprep.subr.mxu0 0.0
    %199 = vmatpush1.msra.mxu0 0.0
    %200 = vmatprep.mubr.f32.mxu0 0.0
    %201 = vmatmul.mubr.f32.gmra.mrb[0].mxu0 %v130
    %v202 = vpop.f32.mrb[0].mxu0
    %v203 = vadd.f32 %v127, %v202
    %v204 = vpop.f32.mrb[0].mxu0
    %205 = vdwg.mxu0
    %206 = vst [vmem:[#allocation3] sm:$0x1] %v203
    // Predicated region
    $region22: #{tpu_custom_call.1} parent=1 // pred_check
      _
    $region23: #{tpu_custom_call.1} parent=1 // pred_check_branch
      %208 = sbr.rel (0) target = $region25
    $region24: #{tpu_custom_call.1} parent=1 // pred_region
      %s210 = ssub.s32 16, 16
      %211 = vsyncadd [#allocation4], %s210
      %s213 = sshll.u32 [#allocation3], 4
      %s214 = int_to_ptr.vmem [resolvable:$true] %s213
      %216 = dma.vmem_to_hbm [thread:$0]  %s214, 16, %s5, [#allocation4]
    $region25: #{tpu_custom_call.1} parent=1 // pred_fallthru
      _
    // Predicated region
    $region26: #{tpu_custom_call.1} parent=1 // pred_check
      _
    $region27: #{tpu_custom_call.1} parent=1 // pred_check_branch
      %218 = sbr.rel (0) target = $region29
    $region28: #{tpu_custom_call.1} parent=1 // pred_region
      %219 = dma.done [#allocation4], 16
    $region29: #{tpu_custom_call.1} parent=1 // pred_fallthru
      _
    %220 = vsyncpa [#allocation4], 1

</llo_original>
